<compile_context>
chip_gen: v5e
topology: v5e:2x2
jax: 0.10.0
libtpu: 0.0.40
codegen_flags: <defaults>
</compile_context>

<pallas_src>
import jax
import jax.numpy as jnp
from jax.experimental import pallas as pl
from jax.experimental.pallas import tpu as pltpu

_LANE = 128


def _round_up(x, m):
    return ((x + m - 1) // m) * m


def _pick_tile(n_lanes, *, tn_max=8192, target_steps=4):
    """Lane-tile size: multiple of 128, <= tn_max, and >= 2 grid steps when
    the problem is big enough (v7x megacore occupancy)."""
    n128 = _round_up(max(int(n_lanes), 1), _LANE)
    n_tiles = n128 // _LANE
    if n_tiles == 1:
        return _LANE
    steps = max(2, min(target_steps, n_tiles), -(-n128 // tn_max))
    return -(-n_tiles // steps) * _LANE


def _mlp_kernel(inp_ref, w_in_ref, w_h16_ref, w_h24_ref, w_h8_ref,
                b24_ref, b8_ref, out_ref):
    f32 = jnp.float32
    x = inp_ref[...]        # (8, tn): rows [x_k(2); u_k(2); u_k1(2); ones; 0]

    # ---- first MLP: tanh(W1) -> tanh(W2) -> tanh(W3) -> tanh(W4) ----
    # b1 is folded into w_in[0] via the constant-1 slab row.
    h = jnp.tanh(jnp.dot(w_in_ref[0], x, preferred_element_type=f32))            # (16, tn)
    h = jnp.tanh(jnp.dot(w_h16_ref[0], h, preferred_element_type=f32)
                 + b24_ref[0])                                                    # (24, tn)
    h = jnp.tanh(jnp.dot(w_h24_ref[0], h, preferred_element_type=f32)
                 + b8_ref[0])                                                     # (8, tn)
    xk1 = jnp.tanh(jnp.dot(w_h8_ref[0], h, preferred_element_type=f32)
                   + b8_ref[1])                                                   # (8, tn)
    # xk1 valid rows 0:2; padded rows are exactly 0 (zero-padded W4/b4).

    # ---- second MLP: cat(x_k1_pred, u_k1) @ W5 == W5a@xk1 + W5b@slab ----
    # (W5b sits at slab columns 4:6 where u_k1 lives; b5 folded via ones row.)
    h = jnp.tanh(jnp.dot(w_in_ref[1], xk1, preferred_element_type=f32)
                 + jnp.dot(w_in_ref[2], x, preferred_element_type=f32))           # (16, tn)
    h = jnp.tanh(jnp.dot(w_h16_ref[1], h, preferred_element_type=f32)
                 + b24_ref[1])                                                    # (24, tn)
    h = jnp.tanh(jnp.dot(w_h24_ref[1], h, preferred_element_type=f32)
                 + b8_ref[2])                                                     # (8, tn)
    xk2 = jnp.tanh(jnp.dot(w_h8_ref[1], h, preferred_element_type=f32)
                   + b8_ref[3])                                                   # (8, tn)

    # Fused lane-dense output: rows 0:2 = x_k1_pred, rows 2:4 = x_k2_pred.
    out_ref[...] = jnp.concatenate([xk1[0:2, :], xk2[0:2, :]], axis=0)


def _init_linear(key, fan_in, fan_out):
    """PyTorch nn.Linear-style uniform init. Returns W (out,in), b (out,)."""
    kw, kb = jax.random.split(key)
    bound = 1.0 / jnp.sqrt(jnp.float32(fan_in))
    w = jax.random.uniform(kw, (fan_out, fan_in), jnp.float32, -bound, bound)
    b = jax.random.uniform(kb, (fan_out,), jnp.float32, -bound, bound)
    return w, b


def make_params(seed=0):
    keys = jax.random.split(jax.random.PRNGKey(seed), 8)
    p = {}
    dims = [(4, 12), (12, 24), (24, 8), (8, 2),
            (4, 12), (12, 24), (24, 8), (8, 2)]
    for i, (fi, fo) in enumerate(dims):
        w, b = _init_linear(keys[i], fi, fo)
        p[f"w{i + 1}"] = w
        p[f"b{i + 1}"] = b
    return p


def pack_params(p):
    """Pack the 8 layers into shape-grouped, zero-padded operands.

    Hidden widths are padded only to the next multiple of 8 (12->16, 24->24,
    8->8, 2->8); zero padding keeps the math exact (padded output rows are
    tanh(0)=0 and padded input columns multiply zeros).  b1/b5 are folded into
    the first-layer weights via the constant-1 slab row (column 6).
    """
    f32 = jnp.float32
    # Layers consuming an 8-row operand (slab or xk1): W1, W5a, W5b.
    w_in = jnp.zeros((3, 16, 8), f32)
    w_in = w_in.at[0, :12, :4].set(p["w1"])           # W1 on [x_k; u_k]
    w_in = w_in.at[0, :12, 6].set(p["b1"])            # b1 folded via ones row
    w_in = w_in.at[1, :12, :2].set(p["w5"][:, :2])    # W5a on x_k1_pred rows
    w_in = w_in.at[2, :12, 4:6].set(p["w5"][:, 2:4])  # W5b on u_k1 slab rows
    w_in = w_in.at[2, :12, 6].set(p["b5"])            # b5 folded via ones row

    # 16 -> 24 layers.
    w_h16 = jnp.zeros((2, 24, 16), f32)
    w_h16 = w_h16.at[0, :, :12].set(p["w2"])
    w_h16 = w_h16.at[1, :, :12].set(p["w6"])

    # 24 -> 8 layers (exact, no padding needed).
    w_h24 = jnp.zeros((2, 8, 24), f32)
    w_h24 = w_h24.at[0].set(p["w3"])
    w_h24 = w_h24.at[1].set(p["w7"])

    # 8 -> 2 layers padded to 8 output rows.
    w_h8 = jnp.zeros((2, 8, 8), f32)
    w_h8 = w_h8.at[0, :2, :].set(p["w4"])
    w_h8 = w_h8.at[1, :2, :].set(p["w8"])

    b24 = jnp.zeros((2, 24, 1), f32)
    b24 = b24.at[0, :, 0].set(p["b2"])
    b24 = b24.at[1, :, 0].set(p["b6"])

    b8 = jnp.zeros((4, 8, 1), f32)
    b8 = b8.at[0, :, 0].set(p["b3"])
    b8 = b8.at[1, :2, 0].set(p["b4"])
    b8 = b8.at[2, :, 0].set(p["b7"])
    b8 = b8.at[3, :2, 0].set(p["b8"])
    return w_in, w_h16, w_h24, w_h8, b24, b8


def ml_model_forward(packed, x_k, u_k, u_k1, *, tn=None):
    """Pallas forward pass.

    x_k, u_k, u_k1: (B, S, 2) float32.  Returns (x_k1_pred, x_k2_pred), each
    (B, S, 2).  `tn` = lanes per grid step (default: auto; multiple of 128,
    <= 8192, and >= 2 grid steps when N allows for v7x megacore).
    """
    w_in, w_h16, w_h24, w_h8, b24, b8 = packed
    B, S, _ = x_k.shape
    N = B * S
    n128 = _round_up(N, _LANE)

    if tn is None:
        tn = _pick_tile(N)
    else:
        tn = max(_LANE, _round_up(int(tn), _LANE))
        tn = min(tn, n128)
        if n128 >= 2 * _LANE and tn >= n128:   # keep >= 2 steps for megacore
            tn = -(-(n128 // _LANE) // 2) * _LANE
    n_pad = _round_up(N, tn)
    grid = n_pad // tn

    # Layout plumbing: pack [x_k; u_k; u_k1; ones] feature-major onto lanes
    # (single fused transpose), zero-pad lanes to n_pad.
    f32 = jnp.float32
    feat = jnp.concatenate(
        [x_k.reshape(N, 2), u_k.reshape(N, 2), u_k1.reshape(N, 2),
         jnp.ones((N, 1), f32)],
        axis=1).astype(f32).T                                   # (7, N)
    inp = jnp.zeros((8, n_pad), f32).at[:7, :N].set(feat)

    out = pl.pallas_call(
        _mlp_kernel,
        out_shape=jax.ShapeDtypeStruct((4, n_pad), jnp.float32),
        grid_spec=pltpu.PrefetchScalarGridSpec(
            num_scalar_prefetch=0,
            grid=(grid,),
            in_specs=[
                pl.BlockSpec((8, tn), lambda i: (0, i)),
                pl.BlockSpec((3, 16, 8), lambda i: (0, 0, 0)),
                pl.BlockSpec((2, 24, 16), lambda i: (0, 0, 0)),
                pl.BlockSpec((2, 8, 24), lambda i: (0, 0, 0)),
                pl.BlockSpec((2, 8, 8), lambda i: (0, 0, 0)),
                pl.BlockSpec((2, 24, 1), lambda i: (0, 0, 0)),
                pl.BlockSpec((4, 8, 1), lambda i: (0, 0, 0)),
            ],
            out_specs=pl.BlockSpec((4, tn), lambda i: (0, i)),
        ),
        compiler_params=pltpu.CompilerParams(
            dimension_semantics=("parallel",)),
    )(inp, w_in, w_h16, w_h24, w_h8, b24, b8)

    # Single fused transpose for both outputs.
    out_t = out[:, :N].T                                        # (N, 4)
    xk1 = out_t[:, 0:2].reshape(B, S, 2)
    xk2 = out_t[:, 2:4].reshape(B, S, 2)
    return xk1, xk2


def _reference_forward(p, x_k, u_k, u_k1):
    """Pure-JAX reference (PyTorch semantics) for verification."""
    h1 = jnp.concatenate([x_k, u_k], axis=2)
    h1 = jnp.tanh(h1 @ p["w1"].T + p["b1"])
    h1 = jnp.tanh(h1 @ p["w2"].T + p["b2"])
    h1 = jnp.tanh(h1 @ p["w3"].T + p["b3"])
    xk1 = jnp.tanh(h1 @ p["w4"].T + p["b4"])
    h2 = jnp.concatenate([xk1, u_k1], axis=2)
    h2 = jnp.tanh(h2 @ p["w5"].T + p["b5"])
    h2 = jnp.tanh(h2 @ p["w6"].T + p["b6"])
    h2 = jnp.tanh(h2 @ p["w7"].T + p["b7"])
    xk2 = jnp.tanh(h2 @ p["w8"].T + p["b8"])
    return xk1, xk2


if __name__ == "__main__":
    params = make_params(seed=0)
    packed = pack_params(params)
    fwd = jax.jit(ml_model_forward)

    # --- small canonical check (B=2, S=8) : single grid step ---
    kx, ku, ku1 = jax.random.split(jax.random.PRNGKey(0), 3)
    B, S = 2, 8
    x_k = jax.random.normal(kx, (B, S, 2), jnp.float32)
    u_k = jax.random.normal(ku, (B, S, 2), jnp.float32)
    u_k1 = jax.random.normal(ku1, (B, S, 2), jnp.float32)

    xk1, xk2 = fwd(packed, x_k, u_k, u_k1)
    jax.block_until_ready((xk1, xk2))
    xk1_ref, xk2_ref = _reference_forward(params, x_k, u_k, u_k1)
    assert jnp.allclose(xk1, xk1_ref, atol=1e-5), "x_k1_pred mismatch (small)"
    assert jnp.allclose(xk2, xk2_ref, atol=1e-5), "x_k2_pred mismatch (small)"

    # --- larger check exercising a multi-step grid + padded lane tail ---
    kx2, ku2, ku12 = jax.random.split(jax.random.PRNGKey(1), 3)
    B2, S2 = 4, 300
    x_k2 = jax.random.normal(kx2, (B2, S2, 2), jnp.float32)
    u_k2 = jax.random.normal(ku2, (B2, S2, 2), jnp.float32)
    u_k12 = jax.random.normal(ku12, (B2, S2, 2), jnp.float32)

    ya, yb = fwd(packed, x_k2, u_k2, u_k12)
    jax.block_until_ready((ya, yb))
    ya_ref, yb_ref = _reference_forward(params, x_k2, u_k2, u_k12)
    assert jnp.allclose(ya, ya_ref, atol=1e-5), "x_k1_pred mismatch (large)"
    assert jnp.allclose(yb, yb_ref, atol=1e-5), "x_k2_pred mismatch (large)"

    print("KERNEL_OK")
</pallas_src>

<mosaic_0001>
module attributes {stable_mosaic.version = 11 : i64} {
  func.func @_mlp_kernel(%arg0: i32, %arg1: memref<8x128xf32, #tpu.memory_space<vmem>>, %arg2: memref<3x16x8xf32, #tpu.memory_space<vmem>>, %arg3: memref<2x24x16xf32, #tpu.memory_space<vmem>>, %arg4: memref<2x8x24xf32, #tpu.memory_space<vmem>>, %arg5: memref<2x8x8xf32, #tpu.memory_space<vmem>>, %arg6: memref<2x24x1xf32, #tpu.memory_space<vmem>>, %arg7: memref<4x8x1xf32, #tpu.memory_space<vmem>>, %arg8: memref<4x128xf32, #tpu.memory_space<vmem>>) attributes {dimension_semantics = [#tpu.dimension_semantics<parallel>], iteration_bounds = array<i64: 1>, scalar_prefetch = 0 : i64, scratch_operands = 0 : i64, tpu.core_type = #tpu.core_type<tc>, window_params = [{transform_indices = @transform_0, window_bounds = array<i64: 8, 128>}, {pipeline_mode = #tpu.pipeline_mode<synchronous>, transform_indices = @transform_1, window_bounds = array<i64: 3, 16, 8>}, {pipeline_mode = #tpu.pipeline_mode<synchronous>, transform_indices = @transform_2, window_bounds = array<i64: 2, 24, 16>}, {pipeline_mode = #tpu.pipeline_mode<synchronous>, transform_indices = @transform_3, window_bounds = array<i64: 2, 8, 24>}, {pipeline_mode = #tpu.pipeline_mode<synchronous>, transform_indices = @transform_4, window_bounds = array<i64: 2, 8, 8>}, {pipeline_mode = #tpu.pipeline_mode<synchronous>, transform_indices = @transform_5, window_bounds = array<i64: 2, 24, 1>}, {pipeline_mode = #tpu.pipeline_mode<synchronous>, transform_indices = @transform_6, window_bounds = array<i64: 4, 8, 1>}, {transform_indices = @transform_7, window_bounds = array<i64: 4, 128>}]} {
    %c0 = arith.constant 0 : index
    %c0_0 = arith.constant 0 : index
    %0 = vector.load %arg1[%c0, %c0_0] : memref<8x128xf32, #tpu.memory_space<vmem>>, vector<8x128xf32>
    %c0_1 = arith.constant 0 : index
    %c0_2 = arith.constant 0 : index
    %c0_3 = arith.constant 0 : index
    %1 = vector.load %arg2[%c0_1, %c0_2, %c0_3] : memref<3x16x8xf32, #tpu.memory_space<vmem>>, vector<1x16x8xf32>
    %2 = vector.shape_cast %1 : vector<1x16x8xf32> to vector<16x8xf32>
    %cst = arith.constant dense<0.000000e+00> : vector<16x128xf32>
    %3 = tpu.matmul %2, %0, %cst {dimension_numbers = #tpu.dot_dimension_numbers<[1], [0], [0], [1], [0, 0, 1, 1], [], []>} : vector<16x8xf32>, vector<8x128xf32>, vector<16x128xf32> -> vector<16x128xf32>
    %4 = math.tanh %3 : vector<16x128xf32>
    %c0_4 = arith.constant 0 : index
    %c0_5 = arith.constant 0 : index
    %c0_6 = arith.constant 0 : index
    %5 = vector.load %arg3[%c0_4, %c0_5, %c0_6] : memref<2x24x16xf32, #tpu.memory_space<vmem>>, vector<1x24x16xf32>
    %6 = vector.shape_cast %5 : vector<1x24x16xf32> to vector<24x16xf32>
    %cst_7 = arith.constant dense<0.000000e+00> : vector<24x128xf32>
    %7 = tpu.matmul %6, %4, %cst_7 {dimension_numbers = #tpu.dot_dimension_numbers<[1], [0], [0], [1], [0, 0, 1, 1], [], []>} : vector<24x16xf32>, vector<16x128xf32>, vector<24x128xf32> -> vector<24x128xf32>
    %c0_8 = arith.constant 0 : index
    %c0_9 = arith.constant 0 : index
    %c0_10 = arith.constant 0 : index
    %8 = vector.load %arg6[%c0_8, %c0_9, %c0_10] : memref<2x24x1xf32, #tpu.memory_space<vmem>>, vector<1x24x1xf32>
    %9 = vector.shape_cast %8 : vector<1x24x1xf32> to vector<24x1xf32>
    %10 = vector.broadcast %9 : vector<24x1xf32> to vector<24x128xf32>
    %11 = arith.addf %7, %10 : vector<24x128xf32>
    %12 = math.tanh %11 : vector<24x128xf32>
    %c0_11 = arith.constant 0 : index
    %c0_12 = arith.constant 0 : index
    %c0_13 = arith.constant 0 : index
    %13 = vector.load %arg4[%c0_11, %c0_12, %c0_13] : memref<2x8x24xf32, #tpu.memory_space<vmem>>, vector<1x8x24xf32>
    %14 = vector.shape_cast %13 : vector<1x8x24xf32> to vector<8x24xf32>
    %cst_14 = arith.constant dense<0.000000e+00> : vector<8x128xf32>
    %15 = tpu.matmul %14, %12, %cst_14 {dimension_numbers = #tpu.dot_dimension_numbers<[1], [0], [0], [1], [0, 0, 1, 1], [], []>} : vector<8x24xf32>, vector<24x128xf32>, vector<8x128xf32> -> vector<8x128xf32>
    %c0_15 = arith.constant 0 : index
    %c0_16 = arith.constant 0 : index
    %c0_17 = arith.constant 0 : index
    %16 = vector.load %arg7[%c0_15, %c0_16, %c0_17] : memref<4x8x1xf32, #tpu.memory_space<vmem>>, vector<1x8x1xf32>
    %17 = vector.shape_cast %16 : vector<1x8x1xf32> to vector<8x1xf32>
    %18 = vector.broadcast %17 : vector<8x1xf32> to vector<8x128xf32>
    %19 = arith.addf %15, %18 : vector<8x128xf32>
    %20 = math.tanh %19 : vector<8x128xf32>
    %c0_18 = arith.constant 0 : index
    %c0_19 = arith.constant 0 : index
    %c0_20 = arith.constant 0 : index
    %21 = vector.load %arg5[%c0_18, %c0_19, %c0_20] : memref<2x8x8xf32, #tpu.memory_space<vmem>>, vector<1x8x8xf32>
    %22 = vector.shape_cast %21 : vector<1x8x8xf32> to vector<8x8xf32>
    %cst_21 = arith.constant dense<0.000000e+00> : vector<8x128xf32>
    %23 = tpu.matmul %22, %20, %cst_21 {dimension_numbers = #tpu.dot_dimension_numbers<[1], [0], [0], [1], [0, 0, 1, 1], [], []>} : vector<8x8xf32>, vector<8x128xf32>, vector<8x128xf32> -> vector<8x128xf32>
    %c1 = arith.constant 1 : index
    %c0_22 = arith.constant 0 : index
    %c0_23 = arith.constant 0 : index
    %24 = vector.load %arg7[%c1, %c0_22, %c0_23] : memref<4x8x1xf32, #tpu.memory_space<vmem>>, vector<1x8x1xf32>
    %25 = vector.shape_cast %24 : vector<1x8x1xf32> to vector<8x1xf32>
    %26 = vector.broadcast %25 : vector<8x1xf32> to vector<8x128xf32>
    %27 = arith.addf %23, %26 : vector<8x128xf32>
    %28 = math.tanh %27 : vector<8x128xf32>
    %c1_24 = arith.constant 1 : index
    %c0_25 = arith.constant 0 : index
    %c0_26 = arith.constant 0 : index
    %29 = vector.load %arg2[%c1_24, %c0_25, %c0_26] : memref<3x16x8xf32, #tpu.memory_space<vmem>>, vector<1x16x8xf32>
    %30 = vector.shape_cast %29 : vector<1x16x8xf32> to vector<16x8xf32>
    %cst_27 = arith.constant dense<0.000000e+00> : vector<16x128xf32>
    %31 = tpu.matmul %30, %28, %cst_27 {dimension_numbers = #tpu.dot_dimension_numbers<[1], [0], [0], [1], [0, 0, 1, 1], [], []>} : vector<16x8xf32>, vector<8x128xf32>, vector<16x128xf32> -> vector<16x128xf32>
    %c2 = arith.constant 2 : index
    %c0_28 = arith.constant 0 : index
    %c0_29 = arith.constant 0 : index
    %32 = vector.load %arg2[%c2, %c0_28, %c0_29] : memref<3x16x8xf32, #tpu.memory_space<vmem>>, vector<1x16x8xf32>
    %33 = vector.shape_cast %32 : vector<1x16x8xf32> to vector<16x8xf32>
    %cst_30 = arith.constant dense<0.000000e+00> : vector<16x128xf32>
    %34 = tpu.matmul %33, %0, %cst_30 {dimension_numbers = #tpu.dot_dimension_numbers<[1], [0], [0], [1], [0, 0, 1, 1], [], []>} : vector<16x8xf32>, vector<8x128xf32>, vector<16x128xf32> -> vector<16x128xf32>
    %35 = arith.addf %31, %34 : vector<16x128xf32>
    %36 = math.tanh %35 : vector<16x128xf32>
    %c1_31 = arith.constant 1 : index
    %c0_32 = arith.constant 0 : index
    %c0_33 = arith.constant 0 : index
    %37 = vector.load %arg3[%c1_31, %c0_32, %c0_33] : memref<2x24x16xf32, #tpu.memory_space<vmem>>, vector<1x24x16xf32>
    %38 = vector.shape_cast %37 : vector<1x24x16xf32> to vector<24x16xf32>
    %cst_34 = arith.constant dense<0.000000e+00> : vector<24x128xf32>
    %39 = tpu.matmul %38, %36, %cst_34 {dimension_numbers = #tpu.dot_dimension_numbers<[1], [0], [0], [1], [0, 0, 1, 1], [], []>} : vector<24x16xf32>, vector<16x128xf32>, vector<24x128xf32> -> vector<24x128xf32>
    %c1_35 = arith.constant 1 : index
    %c0_36 = arith.constant 0 : index
    %c0_37 = arith.constant 0 : index
    %40 = vector.load %arg6[%c1_35, %c0_36, %c0_37] : memref<2x24x1xf32, #tpu.memory_space<vmem>>, vector<1x24x1xf32>
    %41 = vector.shape_cast %40 : vector<1x24x1xf32> to vector<24x1xf32>
    %42 = vector.broadcast %41 : vector<24x1xf32> to vector<24x128xf32>
    %43 = arith.addf %39, %42 : vector<24x128xf32>
    %44 = math.tanh %43 : vector<24x128xf32>
    %c1_38 = arith.constant 1 : index
    %c0_39 = arith.constant 0 : index
    %c0_40 = arith.constant 0 : index
    %45 = vector.load %arg4[%c1_38, %c0_39, %c0_40] : memref<2x8x24xf32, #tpu.memory_space<vmem>>, vector<1x8x24xf32>
    %46 = vector.shape_cast %45 : vector<1x8x24xf32> to vector<8x24xf32>
    %cst_41 = arith.constant dense<0.000000e+00> : vector<8x128xf32>
    %47 = tpu.matmul %46, %44, %cst_41 {dimension_numbers = #tpu.dot_dimension_numbers<[1], [0], [0], [1], [0, 0, 1, 1], [], []>} : vector<8x24xf32>, vector<24x128xf32>, vector<8x128xf32> -> vector<8x128xf32>
    %c2_42 = arith.constant 2 : index
    %c0_43 = arith.constant 0 : index
    %c0_44 = arith.constant 0 : index
    %48 = vector.load %arg7[%c2_42, %c0_43, %c0_44] : memref<4x8x1xf32, #tpu.memory_space<vmem>>, vector<1x8x1xf32>
    %49 = vector.shape_cast %48 : vector<1x8x1xf32> to vector<8x1xf32>
    %50 = vector.broadcast %49 : vector<8x1xf32> to vector<8x128xf32>
    %51 = arith.addf %47, %50 : vector<8x128xf32>
    %52 = math.tanh %51 : vector<8x128xf32>
    %c1_45 = arith.constant 1 : index
    %c0_46 = arith.constant 0 : index
    %c0_47 = arith.constant 0 : index
    %53 = vector.load %arg5[%c1_45, %c0_46, %c0_47] : memref<2x8x8xf32, #tpu.memory_space<vmem>>, vector<1x8x8xf32>
    %54 = vector.shape_cast %53 : vector<1x8x8xf32> to vector<8x8xf32>
    %cst_48 = arith.constant dense<0.000000e+00> : vector<8x128xf32>
    %55 = tpu.matmul %54, %52, %cst_48 {dimension_numbers = #tpu.dot_dimension_numbers<[1], [0], [0], [1], [0, 0, 1, 1], [], []>} : vector<8x8xf32>, vector<8x128xf32>, vector<8x128xf32> -> vector<8x128xf32>
    %c3 = arith.constant 3 : index
    %c0_49 = arith.constant 0 : index
    %c0_50 = arith.constant 0 : index
    %56 = vector.load %arg7[%c3, %c0_49, %c0_50] : memref<4x8x1xf32, #tpu.memory_space<vmem>>, vector<1x8x1xf32>
    %57 = vector.shape_cast %56 : vector<1x8x1xf32> to vector<8x1xf32>
    %58 = vector.broadcast %57 : vector<8x1xf32> to vector<8x128xf32>
    %59 = arith.addf %55, %58 : vector<8x128xf32>
    %60 = math.tanh %59 : vector<8x128xf32>
    %61 = vector.extract_strided_slice %28 {offsets = [0, 0], sizes = [2, 128], strides = [1, 1]} : vector<8x128xf32> to vector<2x128xf32>
    %62 = vector.extract_strided_slice %60 {offsets = [0, 0], sizes = [2, 128], strides = [1, 1]} : vector<8x128xf32> to vector<2x128xf32>
    %63 = tpu.concatenate %61, %62 in 0 : vector<2x128xf32>, vector<2x128xf32> -> vector<4x128xf32>
    %c0_51 = arith.constant 0 : index
    %c0_52 = arith.constant 0 : index
    %64 = vector.load %arg8[%c0_51, %c0_52] : memref<4x128xf32, #tpu.memory_space<vmem>>, vector<4x128xf32>
    tpu.vector_store %arg8[%c0_51, %c0_52], %63 {strides = array<i32>} : memref<4x128xf32, #tpu.memory_space<vmem>>, vector<4x128xf32>,
    return
  }
  func.func @transform_0(%arg0: i32) -> (i32, i32) {
    %c0_i32 = arith.constant 0 : i32
    %c0_i32_0 = arith.constant 0 : i32
    return %c0_i32, %arg0 : i32, i32
  }
  func.func @transform_1(%arg0: i32) -> (i32, i32, i32) {
    %c0_i32 = arith.constant 0 : i32
    %c0_i32_0 = arith.constant 0 : i32
    %c0_i32_1 = arith.constant 0 : i32
    %c0_i32_2 = arith.constant 0 : i32
    return %c0_i32, %c0_i32_0, %c0_i32_1 : i32, i32, i32
  }
  func.func @transform_2(%arg0: i32) -> (i32, i32, i32) {
    %c0_i32 = arith.constant 0 : i32
    %c0_i32_0 = arith.constant 0 : i32
    %c0_i32_1 = arith.constant 0 : i32
    %c0_i32_2 = arith.constant 0 : i32
    return %c0_i32, %c0_i32_0, %c0_i32_1 : i32, i32, i32
  }
  func.func @transform_3(%arg0: i32) -> (i32, i32, i32) {
    %c0_i32 = arith.constant 0 : i32
    %c0_i32_0 = arith.constant 0 : i32
    %c0_i32_1 = arith.constant 0 : i32
    %c0_i32_2 = arith.constant 0 : i32
    return %c0_i32, %c0_i32_0, %c0_i32_1 : i32, i32, i32
  }
  func.func @transform_4(%arg0: i32) -> (i32, i32, i32) {
    %c0_i32 = arith.constant 0 : i32
    %c0_i32_0 = arith.constant 0 : i32
    %c0_i32_1 = arith.constant 0 : i32
    %c0_i32_2 = arith.constant 0 : i32
    return %c0_i32, %c0_i32_0, %c0_i32_1 : i32, i32, i32
  }
  func.func @transform_5(%arg0: i32) -> (i32, i32, i32) {
    %c0_i32 = arith.constant 0 : i32
    %c0_i32_0 = arith.constant 0 : i32
    %c0_i32_1 = arith.constant 0 : i32
    %c0_i32_2 = arith.constant 0 : i32
    return %c0_i32, %c0_i32_0, %c0_i32_1 : i32, i32, i32
  }
  func.func @transform_6(%arg0: i32) -> (i32, i32, i32) {
    %c0_i32 = arith.constant 0 : i32
    %c0_i32_0 = arith.constant 0 : i32
    %c0_i32_1 = arith.constant 0 : i32
    %c0_i32_2 = arith.constant 0 : i32
    return %c0_i32, %c0_i32_0, %c0_i32_1 : i32, i32, i32
  }
  func.func @transform_7(%arg0: i32) -> (i32, i32) {
    %c0_i32 = arith.constant 0 : i32
    %c0_i32_0 = arith.constant 0 : i32
    return %c0_i32, %arg0 : i32, i32
  }
}

</mosaic_0001>

<llo_original>
// kernel: ml_model_forward.1
$region0: #{ml_model_forward.1}
  #allocation0 [shape = 'u32[]', space=smem, size = 0x4, offset = 0x4, fixed_abs, tag = 'smem constant byte address 0x4 - core index']
  #allocation1 [shape = 'u32[72,128]{1,0:T(1,128)}', space=vmem, size = 0x9000, scoped, tag = 'internal scratch']
  %s0 = inlined_call_operand.vmem [shape: f32[8,128], index: 0, kind: input, shape index: {}]
  %s1 = inlined_call_operand.vmem [shape: f32[3,16,8], index: 1, kind: input, shape index: {}]
  %s2 = inlined_call_operand.vmem [shape: f32[2,24,16], index: 2, kind: input, shape index: {}]
  %s3 = inlined_call_operand.vmem [shape: f32[2,8,24], index: 3, kind: input, shape index: {}]
  %s4 = inlined_call_operand.vmem [shape: f32[2,8,8], index: 4, kind: input, shape index: {}]
  %s5 = inlined_call_operand.vmem [shape: f32[2,24,1], index: 5, kind: input, shape index: {}]
  %s6 = inlined_call_operand.vmem [shape: f32[4,8,1], index: 6, kind: input, shape index: {}]
  %s7 = inlined_call_operand.vmem [shape: f32[4,128], index: 7, kind: output, shape index: {}]
  %s8 = sld [smem:[#allocation0]]
  $region38: #{ml_model_forward.1} parent=0
    _
  %s10 = ssub.s32 1, %s8
  %s11 = scalar_select 0, %s10, %s8
  // Predicated region
  $region2: #{ml_model_forward.1} parent=0 // pred_check
    _
  $region3: #{ml_model_forward.1} parent=0 // pred_check_branch
    %13 = sbr.rel (0) target = $region5
  $region4: #{ml_model_forward.1} parent=0 // pred_region
    _
  $region5: #{ml_model_forward.1} parent=0 // pred_fallthru
    _
  // Predicated region
  $region6: #{ml_model_forward.1} parent=0 // pred_check
    _
  $region7: #{ml_model_forward.1} parent=0 // pred_check_branch
    %15 = sbr.rel (0) target = $region9
  $region8: #{ml_model_forward.1} parent=0 // pred_region
    _
  $region9: #{ml_model_forward.1} parent=0 // pred_fallthru
    _
  // Predicated region
  $region10: #{ml_model_forward.1} parent=0 // pred_check
    _
  $region11: #{ml_model_forward.1} parent=0 // pred_check_branch
    %17 = sbr.rel (0) target = $region13
  $region12: #{ml_model_forward.1} parent=0 // pred_region
    _
  $region13: #{ml_model_forward.1} parent=0 // pred_fallthru
    _
  // Predicated region
  $region14: #{ml_model_forward.1} parent=0 // pred_check
    _
  $region15: #{ml_model_forward.1} parent=0 // pred_check_branch
    %19 = sbr.rel (0) target = $region17
  $region16: #{ml_model_forward.1} parent=0 // pred_region
    _
  $region17: #{ml_model_forward.1} parent=0 // pred_fallthru
    _
  // Predicated region
  $region18: #{ml_model_forward.1} parent=0 // pred_check
    _
  $region19: #{ml_model_forward.1} parent=0 // pred_check_branch
    %21 = sbr.rel (0) target = $region21
  $region20: #{ml_model_forward.1} parent=0 // pred_region
    _
  $region21: #{ml_model_forward.1} parent=0 // pred_fallthru
    _
  // Predicated region
  $region22: #{ml_model_forward.1} parent=0 // pred_check
    _
  $region23: #{ml_model_forward.1} parent=0 // pred_check_branch
    %23 = sbr.rel (0) target = $region25
  $region24: #{ml_model_forward.1} parent=0 // pred_region
    _
  $region25: #{ml_model_forward.1} parent=0 // pred_fallthru
    _
  // Predicated region
  $region26: #{ml_model_forward.1} parent=0 // pred_check
    _
  $region27: #{ml_model_forward.1} parent=0 // pred_check_branch
    %25 = sbr.rel (0) target = $region29
  $region28: #{ml_model_forward.1} parent=0 // pred_region
    _
  $region29: #{ml_model_forward.1} parent=0 // pred_fallthru
    _
  %v26 = vld [vmem:[%s0] sm:$0xff]
  %v27 = vld [vmem:[%s1] sm:$0xff]
  %v28 = vld [vmem:[%s1 + $0x8] sm:$0xff]
  %vm29 = vcmask 64512
  %v31 = vsel %vm29, %v27, 0
  %v34 = vsel %vm29, %v28, 0
  %36 = vmatpush.msra.mxu0 0.0
  %37 = vmatpush.msra.mxu0 0.0
  %38 = vmatpush.msra.mxu0 0.0
  %39 = vmatpush.msra.mxu0 0.0
  %40 = vmatpush.msra.mxu0 0.0
  %41 = vmatpush.msra.mxu0 0.0
  %42 = vmatpush.msra.mxu0 0.0
  %43 = vmatpush.msra.mxu0 0.0
  %44 = vmatpush.msra.mxu0 0.0
  %45 = vmatpush.msra.mxu0 0.0
  %46 = vmatpush.msra.mxu0 0.0
  %47 = vmatpush.msra.mxu0 0.0
  %48 = vmatpush.msra.mxu0 0.0
  %49 = vmatpush.msra.mxu0 0.0
  %50 = vmatpush.msra.mxu0 0.0
  %51 = vmatpush.msra.mxu0 %v26
  %52 = vmatmul.f32.gmra.mxu0 %v31
  %v53 = vpop.f32.mrf.mxu0
  %v54 = vadd.f32 0.0, %v53
  %55 = vmatmul.f32.gmra.mxu0 %v34
  %v56 = vpop.f32.mrf.mxu0
  %v57 = vadd.f32 0.0, %v56
  %58 = vdwg.mxu0
  %v59 = vtanh.pop %v54
  %v60 = vtanh.pop %v57
  %v61 = vld [vmem:[%s2] sm:$0xff]
  %v62 = vld [vmem:[%s2 + $0x8] sm:$0xff]
  %v63 = vld [vmem:[%s2 + $0x10] sm:$0xff]
  %v64 = vld [vmem:[%s5] sm:$0xff]
  %v65 = vld [vmem:[%s5 + $0x8] sm:$0xff]
  %v66 = vld [vmem:[%s5 + $0x10] sm:$0xff]
  %68 = vset.pattern.permute.xlu0 0
  %69 = vperm.xlu0 %68, %v64
  %v70 = vpop.permute.xlu0 %69
  %73 = vset.pattern.permute.xlu0 0
  %74 = vperm.xlu0 %73, %v65
  %v75 = vpop.permute.xlu0 %74
  %78 = vset.pattern.permute.xlu0 0
  %79 = vperm.xlu0 %78, %v66
  %v80 = vpop.permute.xlu0 %79
  %vm82 = vcmask 130048
  %v84 = vsel %vm82, %v61, 0
  %v87 = vsel %vm82, %v62, 0
  %v90 = vsel %vm82, %v63, 0
  %92 = vmatpush.msra.mxu0 0.0
  %93 = vmatpush.msra.mxu0 0.0
  %94 = vmatpush.msra.mxu0 0.0
  %95 = vmatpush.msra.mxu0 0.0
  %96 = vmatpush.msra.mxu0 0.0
  %97 = vmatpush.msra.mxu0 0.0
  %98 = vmatpush.msra.mxu0 0.0
  %99 = vmatpush.msra.mxu0 0.0
  %100 = vmatpush.msra.mxu0 0.0
  %101 = vmatpush.msra.mxu0 0.0
  %102 = vmatpush.msra.mxu0 0.0
  %103 = vmatpush.msra.mxu0 0.0
  %104 = vmatpush.msra.mxu0 0.0
  %105 = vmatpush.msra.mxu0 0.0
  %106 = vmatpush.msra.mxu0 %v60
  %107 = vmatpush.msra.mxu0 %v59
  %108 = vmatmul.f32.gmra.mxu0 %v84
  %v109 = vpop.f32.mrf.mxu0
  %v110 = vadd.f32 %v70, %v109
  %111 = vmatmul.f32.gmra.mxu0 %v87
  %v112 = vpop.f32.mrf.mxu0
  %v113 = vadd.f32 %v75, %v112
  %114 = vmatmul.f32.gmra.mxu0 %v90
  %v115 = vpop.f32.mrf.mxu0
  %v116 = vadd.f32 %v80, %v115
  %117 = vdwg.mxu0
  %v118 = vtanh.pop %v110
  %v119 = vtanh.pop %v113
  %v120 = vtanh.pop %v116
  %v121 = vld [vmem:[%s3] sm:$0xff]
  %v122 = vld [vmem:[%s6] sm:$0xff]
  %124 = vset.pattern.permute.xlu0 0
  %125 = vperm.xlu0 %124, %v122
  %v126 = vpop.permute.xlu0 %125
  %vm128 = vcmask 195584
  %v130 = vsel %vm128, %v121, 0
  %132 = vmatpush.msra.mxu0 0.0
  %133 = vmatpush.msra.mxu0 0.0
  %134 = vmatpush.msra.mxu0 0.0
  %135 = vmatpush.msra.mxu0 0.0
  %136 = vmatpush.msra.mxu0 0.0
  %137 = vmatpush.msra.mxu0 0.0
  %138 = vmatpush.msra.mxu0 0.0
  %139 = vmatpush.msra.mxu0 0.0
  %140 = vmatpush.msra.mxu0 0.0
  %141 = vmatpush.msra.mxu0 0.0
  %142 = vmatpush.msra.mxu0 0.0
  %143 = vmatpush.msra.mxu0 0.0
  %144 = vmatpush.msra.mxu0 0.0
  %145 = vmatpush.msra.mxu0 %v120
  %146 = vmatpush.msra.mxu0 %v119
  %147 = vmatpush.msra.mxu0 %v118
  %148 = vmatmul.f32.gmra.mxu0 %v130
  %v149 = vpop.f32.mrf.mxu0
  %v150 = vadd.f32 %v126, %v149
  %151 = vdwg.mxu0
  %v152 = vtanh.pop %v150
  %v153 = vld [vmem:[%s4] sm:$0xff]
  %s154 = scalar_lea.vmem %s6, 8
  %v155 = vld [vmem:[%s154] sm:$0xff]
  %157 = vset.pattern.permute.xlu0 0
  %158 = vperm.xlu0 %157, %v155
  %v159 = vpop.permute.xlu0 %158
  %v162 = vsel %vm29, %v153, 0
  %164 = vmatpush.msra.mxu0 0.0
  %165 = vmatpush.msra.mxu0 0.0
  %166 = vmatpush.msra.mxu0 0.0
  %167 = vmatpush.msra.mxu0 0.0
  %168 = vmatpush.msra.mxu0 0.0
  %169 = vmatpush.msra.mxu0 0.0
  %170 = vmatpush.msra.mxu0 0.0
  %171 = vmatpush.msra.mxu0 0.0
  %172 = vmatpush.msra.mxu0 0.0
  %173 = vmatpush.msra.mxu0 0.0
  %174 = vmatpush.msra.mxu0 0.0
  %175 = vmatpush.msra.mxu0 0.0
  %176 = vmatpush.msra.mxu0 0.0
  %177 = vmatpush.msra.mxu0 0.0
  %178 = vmatpush.msra.mxu0 0.0
  %179 = vmatpush.msra.mxu0 %v152
  %180 = vmatmul.f32.gmra.mxu0 %v162
  %v181 = vpop.f32.mrf.mxu0
  %v182 = vadd.f32 %v159, %v181
  %183 = vdwg.mxu0
  %v184 = vtanh.pop %v182
  %s185 = scalar_lea.vmem %s1, 16
  %v186 = vld [vmem:[%s185] sm:$0xff]
  %v187 = vld [vmem:[%s185 + $0x8] sm:$0xff]
  %s188 = scalar_lea.vmem %s1, 32
  %v189 = vld [vmem:[%s188] sm:$0xff]
  %v190 = vld [vmem:[%s188 + $0x8] sm:$0xff]
  %v192 = vsel %vm29, %v189, 0
  %v195 = vsel %vm29, %v190, 0
  %197 = vmatpush.msra.mxu0 0.0
  %198 = vmatpush.msra.mxu0 0.0
  %199 = vmatpush.msra.mxu0 0.0
  %200 = vmatpush.msra.mxu0 0.0
  %201 = vmatpush.msra.mxu0 0.0
  %202 = vmatpush.msra.mxu0 0.0
  %203 = vmatpush.msra.mxu0 0.0
  %204 = vmatpush.msra.mxu0 0.0
  %205 = vmatpush.msra.mxu0 0.0
  %206 = vmatpush.msra.mxu0 0.0
  %207 = vmatpush.msra.mxu0 0.0
  %208 = vmatpush.msra.mxu0 0.0
  %209 = vmatpush.msra.mxu0 0.0
  %210 = vmatpush.msra.mxu0 0.0
  %211 = vmatpush.msra.mxu0 0.0
  %212 = vmatpush.msra.mxu0 %v26
  %213 = vmatmul.f32.gmra.mxu0 %v192
  %v214 = vpop.f32.mrf.mxu0
  %v215 = vadd.f32 0.0, %v214
  %216 = vmatmul.f32.gmra.mxu0 %v195
  %v217 = vpop.f32.mrf.mxu0
  %v218 = vadd.f32 0.0, %v217
  %219 = vdwg.mxu0
  %v221 = vsel %vm29, %v186, 0
  %v224 = vsel %vm29, %v187, 0
  %226 = vmatpush.msra.mxu0 0.0
  %227 = vmatpush.msra.mxu0 0.0
  %228 = vmatpush.msra.mxu0 0.0
  %229 = vmatpush.msra.mxu0 0.0
  %230 = vmatpush.msra.mxu0 0.0
  %231 = vmatpush.msra.mxu0 0.0
  %232 = vmatpush.msra.mxu0 0.0
  %233 = vmatpush.msra.mxu0 0.0
  %234 = vmatpush.msra.mxu0 0.0
  %235 = vmatpush.msra.mxu0 0.0
  %236 = vmatpush.msra.mxu0 0.0
  %237 = vmatpush.msra.mxu0 0.0
  %238 = vmatpush.msra.mxu0 0.0
  %239 = vmatpush.msra.mxu0 0.0
  %240 = vmatpush.msra.mxu0 0.0
  %241 = vmatpush.msra.mxu0 %v184
  %242 = vmatmul.f32.gmra.mxu0 %v221
  %v243 = vpop.f32.mrf.mxu0
  %v244 = vadd.f32 %v215, %v243
  %245 = vmatmul.f32.gmra.mxu0 %v224
  %v246 = vpop.f32.mrf.mxu0
  %v247 = vadd.f32 %v218, %v246
  %248 = vdwg.mxu0
  %v249 = vtanh.pop %v244
  %v250 = vtanh.pop %v247
  %s251 = scalar_lea.vmem %s2, 24
  %v252 = vld [vmem:[%s251] sm:$0xff]
  %v253 = vld [vmem:[%s251 + $0x8] sm:$0xff]
  %v254 = vld [vmem:[%s251 + $0x10] sm:$0xff]
  %s255 = scalar_lea.vmem %s5, 24
  %v256 = vld [vmem:[%s255] sm:$0xff]
  %v257 = vld [vmem:[%s255 + $0x8] sm:$0xff]
  %v258 = vld [vmem:[%s255 + $0x10] sm:$0xff]
  %260 = vset.pattern.permute.xlu0 0
  %261 = vperm.xlu0 %260, %v256
  %v262 = vpop.permute.xlu0 %261
  %265 = vset.pattern.permute.xlu0 0
  %266 = vperm.xlu0 %265, %v257
  %v267 = vpop.permute.xlu0 %266
  %270 = vset.pattern.permute.xlu0 0
  %271 = vperm.xlu0 %270, %v258
  %v272 = vpop.permute.xlu0 %271
  %v275 = vsel %vm82, %v252, 0
  %v278 = vsel %vm82, %v253, 0
  %v281 = vsel %vm82, %v254, 0
  %283 = vmatpush.msra.mxu0 0.0
  %284 = vmatpush.msra.mxu0 0.0
  %285 = vmatpush.msra.mxu0 0.0
  %286 = vmatpush.msra.mxu0 0.0
  %287 = vmatpush.msra.mxu0 0.0
  %288 = vmatpush.msra.mxu0 0.0
  %289 = vmatpush.msra.mxu0 0.0
  %290 = vmatpush.msra.mxu0 0.0
  %291 = vmatpush.msra.mxu0 0.0
  %292 = vmatpush.msra.mxu0 0.0
  %293 = vmatpush.msra.mxu0 0.0
  %294 = vmatpush.msra.mxu0 0.0
  %295 = vmatpush.msra.mxu0 0.0
  %296 = vmatpush.msra.mxu0 0.0
  %297 = vmatpush.msra.mxu0 %v250
  %298 = vmatpush.msra.mxu0 %v249
  %299 = vmatmul.f32.gmra.mxu0 %v275
  %v300 = vpop.f32.mrf.mxu0
  %v301 = vadd.f32 %v262, %v300
  %302 = vmatmul.f32.gmra.mxu0 %v278
  %v303 = vpop.f32.mrf.mxu0
  %v304 = vadd.f32 %v267, %v303
  %305 = vmatmul.f32.gmra.mxu0 %v281
  %v306 = vpop.f32.mrf.mxu0
  %v307 = vadd.f32 %v272, %v306
  %308 = vdwg.mxu0
  %v309 = vtanh.pop %v301
  %v310 = vtanh.pop %v304
  %v311 = vtanh.pop %v307
  %s312 = scalar_lea.vmem %s3, 8
  %v313 = vld [vmem:[%s312] sm:$0xff]
  %s314 = scalar_lea.vmem %s6, 16
  %v315 = vld [vmem:[%s314] sm:$0xff]
  %317 = vset.pattern.permute.xlu0 0
  %318 = vperm.xlu0 %317, %v315
  %v319 = vpop.permute.xlu0 %318
  %v322 = vsel %vm128, %v313, 0
  %324 = vmatpush.msra.mxu0 0.0
  %325 = vmatpush.msra.mxu0 0.0
  %326 = vmatpush.msra.mxu0 0.0
  %327 = vmatpush.msra.mxu0 0.0
  %328 = vmatpush.msra.mxu0 0.0
  %329 = vmatpush.msra.mxu0 0.0
  %330 = vmatpush.msra.mxu0 0.0
  %331 = vmatpush.msra.mxu0 0.0
  %332 = vmatpush.msra.mxu0 0.0
  %333 = vmatpush.msra.mxu0 0.0
  %334 = vmatpush.msra.mxu0 0.0
  %335 = vmatpush.msra.mxu0 0.0
  %336 = vmatpush.msra.mxu0 0.0
  %337 = vmatpush.msra.mxu0 %v311
  %338 = vmatpush.msra.mxu0 %v310
  %339 = vmatpush.msra.mxu0 %v309
  %340 = vmatmul.f32.gmra.mxu0 %v322
  %v341 = vpop.f32.mrf.mxu0
  %v342 = vadd.f32 %v319, %v341
  %343 = vdwg.mxu0
  %v344 = vtanh.pop %v342
  %s345 = scalar_lea.vmem %s4, 8
  %v346 = vld [vmem:[%s345] sm:$0xff]
  %s347 = scalar_lea.vmem %s6, 24
  %v348 = vld [vmem:[%s347] sm:$0xff]
  %350 = vset.pattern.permute.xlu0 0
  %351 = vperm.xlu0 %350, %v348
  %v352 = vpop.permute.xlu0 %351
  %v355 = vsel %vm29, %v346, 0
  %357 = vmatpush.msra.mxu0 0.0
  %358 = vmatpush.msra.mxu0 0.0
  %359 = vmatpush.msra.mxu0 0.0
  %360 = vmatpush.msra.mxu0 0.0
  %361 = vmatpush.msra.mxu0 0.0
  %362 = vmatpush.msra.mxu0 0.0
  %363 = vmatpush.msra.mxu0 0.0
  %364 = vmatpush.msra.mxu0 0.0
  %365 = vmatpush.msra.mxu0 0.0
  %366 = vmatpush.msra.mxu0 0.0
  %367 = vmatpush.msra.mxu0 0.0
  %368 = vmatpush.msra.mxu0 0.0
  %369 = vmatpush.msra.mxu0 0.0
  %370 = vmatpush.msra.mxu0 0.0
  %371 = vmatpush.msra.mxu0 0.0
  %372 = vmatpush.msra.mxu0 %v344
  %373 = vmatmul.f32.gmra.mxu0 %v355
  %v374 = vpop.f32.mrf.mxu0
  %v375 = vadd.f32 %v352, %v374
  %376 = vdwg.mxu0
  %v377 = vtanh.pop %v375
  %v379 = vrot.slane %v377, 6
  %vm381 = vcmask 1041408
  %v382 = vsel %vm381, %v184, %v379
  %383 = vst [vmem:[%s7] sm:$0xf] %v382
  // Predicated region
  $region30: #{ml_model_forward.1} parent=0 // pred_check
    _
  $region31: #{ml_model_forward.1} parent=0 // pred_check_branch
    %385 = sbr.rel (0) target = $region33
  $region32: #{ml_model_forward.1} parent=0 // pred_region
    _
  $region33: #{ml_model_forward.1} parent=0 // pred_fallthru
    _
  // Predicated region
  $region34: #{ml_model_forward.1} parent=0 // pred_check
    _
  $region35: #{ml_model_forward.1} parent=0 // pred_check_branch
    %387 = sbr.rel (0) target = $region37
  $region36: #{ml_model_forward.1} parent=0 // pred_region
    _
  $region37: #{ml_model_forward.1} parent=0 // pred_fallthru
    _

</llo_original>
